<compile_context>
chip_gen: v6e
topology: v6e:2x2x1
jax: 0.10.0
libtpu: 0.0.40
codegen_flags: <defaults>
</compile_context>

<pallas_src>
import functools

import jax
import jax.numpy as jnp
from jax.experimental import pallas as pl
from jax.experimental.pallas import tpu as pltpu


# ----------------------------------------------------------------------------
# Pallas kernel
# ----------------------------------------------------------------------------
def _make_kernel(num_layers: int, n_points: int, bb: int, c_pad: int):
    """Fused forward pass for BB batch elements (both clouds stacked).

    Refs:
      x_ref : (2*BB*N, C)        f32   rows [0:BB*N] cloud1, [BB*N:] cloud2
      w_ref : (L, C, 4*C)        f32   [WA_local | WB_local | WA_pool | WB_pool]
      b_ref : (L, 1, C)          f32   b_A + b_B (pre-summed)
      o_ref : (1, BB, 2*C)       f32   row i = [cloud1_out_i | cloud2_out_i]
    """
    N = n_points
    L = num_layers
    C = c_pad
    H = bb * N            # rows per cloud
    R = 2 * H             # point rows per grid step

    def kernel(x_ref, w_ref, b_ref, o_ref):
        h = x_ref[...]                                            # (R, C) f32

        for k in range(L):                                        # static unroll
            # Per-(cloud, batch) means: ONE reduce per layer, reused by A and B.
            m = jnp.mean(h.reshape(2 * bb, N, C), axis=1)         # (2*BB, C)

            # ONE MXU push per layer: [points ; means] @ [WA_l|WB_l|WA_p|WB_p].
            z = jnp.concatenate([h, m], axis=0)                   # (R+2*BB, C)
            y = jnp.dot(z, w_ref[k],
                        preferred_element_type=jnp.float32)       # (R+2*BB, 4C)

            ya = y[:R, 0 * C:1 * C]                               # A local, per point
            yb = y[:R, 1 * C:2 * C]                               # B local, per point
            pa = y[R:, 2 * C:3 * C]                               # A pooled, per cloud
            pb = y[R:, 3 * C:4 * C]                               # B pooled, per cloud

            # Cloud swap: t[c1] = A(c1)+B(c2), t[c2] = A(c2)+B(c1).
            # Tile-aligned half rotation along the sublane axis (shift % 8 == 0).
            t = ya + jnp.concatenate([yb[H:], yb[:H]], axis=0)    # (R, C)
            p = pa + jnp.concatenate([pb[bb:], pb[:bb]], axis=0)  # (2*BB, C)
            p = p + b_ref[k]                                      # fold bias (bA+bB)

            if k < L - 1:
                # Implicit broadcast of pooled+bias over the point axis (no
                # broadcast_to / concat temporaries), ReLU in f32.
                h = jnp.maximum(
                    t.reshape(2 * bb, N, C) + p[:, None, :], 0.0
                ).reshape(R, C)
            else:
                # Final layer: mean over points, pooled/bias added once per cloud.
                r = jnp.mean(t.reshape(2 * bb, N, C), axis=1) + p  # (2*BB, C)
                # One lane-packed store per step: row i = [cloud1_i | cloud2_i].
                o_ref[0] = jnp.concatenate([r[:bb], r[bb:]], axis=1)  # (BB, 2C)

    return kernel


# ----------------------------------------------------------------------------
# Wrapper
# ----------------------------------------------------------------------------
def _choose_bb(batch: int, n_points: int) -> int:
    """Batch elements folded per grid step (always a divisor of `batch`)."""
    target_rows = 256                                  # feed the MXU real LHS tiles
    bb = max(1, min(batch, target_rows // (2 * n_points)))
    while batch % bb:
        bb -= 1
    # Keep >= 2 parallel grid steps when possible (v7x has 2 TensorCores).
    if batch // bb < 2 and batch >= 2:
        bb = batch // 2
        while batch % bb:
            bb -= 1
    return bb


def _pack_params(params, c_pad):
    """Lane-pack the four per-layer weights into one (L, C, 4C) array."""
    L = len(params)
    w = jnp.zeros((L, c_pad, 4 * c_pad), jnp.float32)
    b = jnp.zeros((L, 1, c_pad), jnp.float32)
    for k, (wa_l, wa_p, ba, wb_l, wb_p, bb_) in enumerate(params):
        cin, cout = wa_l.shape
        w = w.at[k, :cin, 0 * c_pad:0 * c_pad + cout].set(wa_l)
        w = w.at[k, :cin, 1 * c_pad:1 * c_pad + cout].set(wb_l)
        w = w.at[k, :cin, 2 * c_pad:2 * c_pad + cout].set(wa_p)
        w = w.at[k, :cin, 3 * c_pad:3 * c_pad + cout].set(wb_p)
        b = b.at[k, 0, :cout].set((ba + bb_).reshape(-1))
    return w, b


@functools.partial(jax.jit, static_argnames=("bb", "c_out"))
def _forward(cloud1, cloud2, w, b, *, bb, c_out):
    B, c_in, N = cloud1.shape
    L, c_pad, _ = w.shape
    ng = B // bb
    R = 2 * bb * N

    # (B, Cin, N) x2 -> (NG*R, c_pad), rows ordered [chunk, cloud, batch, point]
    # so each grid step sees its cloud1 block followed by its cloud2 block.
    x = jnp.stack([cloud1, cloud2], axis=1)             # (B, 2, Cin, N)
    x = jnp.transpose(x, (0, 1, 3, 2))                  # (B, 2, N, Cin)
    x = x.reshape(ng, bb, 2, N, c_in)
    x = jnp.transpose(x, (0, 2, 1, 3, 4))               # (NG, 2, BB, N, Cin)
    x = x.reshape(ng * R, c_in)
    x = jnp.pad(x, ((0, 0), (0, c_pad - c_in)))         # zero-pad channels

    out = pl.pallas_call(
        _make_kernel(L, N, bb, c_pad),
        out_shape=jax.ShapeDtypeStruct((ng, bb, 2 * c_pad), jnp.float32),
        grid=(ng,),
        in_specs=[
            pl.BlockSpec((R, c_pad), lambda g: (g, 0)),
            pl.BlockSpec((L, c_pad, 4 * c_pad), lambda g: (0, 0, 0)),
            pl.BlockSpec((L, 1, c_pad), lambda g: (0, 0, 0)),
        ],
        out_specs=pl.BlockSpec((1, bb, 2 * c_pad), lambda g: (g, 0, 0)),
        compiler_params=pltpu.CompilerParams(
            dimension_semantics=("parallel",)),
    )(x, w, b)

    out = out.reshape(B, 2 * c_pad)                     # batch = g*bb + i order
    return out[:, :c_out], out[:, c_pad:c_pad + c_out]


def inv_global_two_cloud(cloud1, cloud2, params):
    """cloud1, cloud2: (B, C_in, N) like the PyTorch module."""
    B, c_in, N = cloud1.shape
    # TODO(synk): if N % 8 != 0, zero-pad the point axis AND mask padded points
    #             out of the means (padded rows become non-zero after layer 0).
    assert N % 8 == 0, "point count must be a multiple of 8"
    layer_dims = [params[0][0].shape[0]] + [p[0].shape[1] for p in params]
    c_pad = max(8, -(-max(layer_dims) // 8) * 8)        # common channel width
    w, b = _pack_params(params, c_pad)
    bb = _choose_bb(B, N)
    return _forward(cloud1, cloud2, w, b, bb=bb, c_out=layer_dims[-1])


# ----------------------------------------------------------------------------
# Pure-JAX reference (mirrors the PyTorch forward), f32 throughout
# ----------------------------------------------------------------------------
def reference(cloud1, cloud2, params):
    def pn(x, wl, wp, b):
        loc = jnp.einsum("bcn,co->bon", x, wl)
        pooled = (jnp.mean(x, axis=2) @ wp)[:, :, None]
        return loc + pooled + b.reshape(1, -1, 1)

    x1, x2 = cloud1, cloud2
    L = len(params)
    for k in range(L):
        wa_l, wa_p, ba, wb_l, wb_p, bb_ = params[k]
        t1 = pn(x1, wa_l, wa_p, ba) + pn(x2, wb_l, wb_p, bb_)
        t2 = pn(x2, wa_l, wa_p, ba) + pn(x1, wb_l, wb_p, bb_)
        if k < L - 1:
            x1, x2 = jax.nn.relu(t1), jax.nn.relu(t2)
        else:
            x1, x2 = t1, t2
    return jnp.mean(x1, axis=2), jnp.mean(x2, axis=2)


# ----------------------------------------------------------------------------
# Parameter init (deterministic, synthetic)
# ----------------------------------------------------------------------------
def init_params(key, layer_struct):
    params = []
    for j in range(len(layer_struct) - 1):
        cin, cout = layer_struct[j], layer_struct[j + 1]
        key, *ks = jax.random.split(key, 7)
        scale = 1.0 / jnp.sqrt(jnp.float32(cin))
        layer = (
            jax.random.normal(ks[0], (cin, cout), jnp.float32) * scale,  # WA_local
            jax.random.normal(ks[1], (cin, cout), jnp.float32) * scale,  # WA_pool
            jax.random.normal(ks[2], (1, cout), jnp.float32) * 0.1,      # bA
            jax.random.normal(ks[3], (cin, cout), jnp.float32) * scale,  # WB_local
            jax.random.normal(ks[4], (cin, cout), jnp.float32) * scale,  # WB_pool
            jax.random.normal(ks[5], (1, cout), jnp.float32) * 0.1,      # bB
        )
        params.append(layer)
    return params


if __name__ == "__main__":
    key = jax.random.PRNGKey(0)
    k_p, k_c1, k_c2 = jax.random.split(key, 3)

    layer_struct = [4, 32, 16]          # 2 PNLayer pairs
    B, C_in, N = 2, layer_struct[0], 16

    params = init_params(k_p, layer_struct)
    cloud1 = jax.random.normal(k_c1, (B, C_in, N), jnp.float32)
    cloud2 = jax.random.normal(k_c2, (B, C_in, N), jnp.float32)

    out1, out2 = inv_global_two_cloud(cloud1, cloud2, params)
    out1, out2 = jax.block_until_ready((out1, out2))
    assert out1.shape == (B, layer_struct[-1])
    assert out2.shape == (B, layer_struct[-1])

    ref1, ref2 = reference(cloud1, cloud2, params)
    # f32 everywhere; modest tolerance covers MXU f32-pass decomposition.
    assert jnp.allclose(out1, ref1, atol=3e-2, rtol=3e-2)
    assert jnp.allclose(out2, ref2, atol=3e-2, rtol=3e-2)

    print("KERNEL_OK")
</pallas_src>

<mosaic_0001>
module attributes {stable_mosaic.version = 11 : i64} {
  func.func @kernel(%arg0: i32, %arg1: memref<32x32xf32, #tpu.memory_space<vmem>>, %arg2: memref<2x32x128xf32, #tpu.memory_space<vmem>>, %arg3: memref<2x1x32xf32, #tpu.memory_space<vmem>>, %arg4: memref<1x1x64xf32, #tpu.memory_space<vmem>>) attributes {dimension_semantics = [#tpu.dimension_semantics<parallel>], iteration_bounds = array<i64: 2>, scalar_prefetch = 0 : i64, scratch_operands = 0 : i64, tpu.core_type = #tpu.core_type<tc>, window_params = [{transform_indices = @transform_0, window_bounds = array<i64: 32, 32>}, {pipeline_mode = #tpu.pipeline_mode<synchronous>, transform_indices = @transform_1, window_bounds = array<i64: 2, 32, 128>}, {pipeline_mode = #tpu.pipeline_mode<synchronous>, transform_indices = @transform_2, window_bounds = array<i64: 2, 1, 32>}, {transform_indices = @transform_3, window_bounds = array<i64: 1, 1, 64>}]} {
    %c0 = arith.constant 0 : index
    %c0_0 = arith.constant 0 : index
    %0 = vector.load %arg1[%c0, %c0_0] : memref<32x32xf32, #tpu.memory_space<vmem>>, vector<32x32xf32>
    %1 = vector.shape_cast %0 : vector<32x32xf32> to vector<2x16x32xf32>
    %cst = arith.constant dense<0.000000e+00> : vector<2x32xf32>
    %2 = vector.multi_reduction <add>, %1, %cst [1] : vector<2x16x32xf32> to vector<2x32xf32>
    %cst_1 = arith.constant 1.600000e+01 : f32
    %3 = vector.broadcast %cst_1 : f32 to vector<2x32xf32>
    %4 = arith.divf %2, %3 : vector<2x32xf32>
    %5 = tpu.concatenate %0, %4 in 0 : vector<32x32xf32>, vector<2x32xf32> -> vector<34x32xf32>
    %c0_2 = arith.constant 0 : index
    %c0_3 = arith.constant 0 : index
    %c0_4 = arith.constant 0 : index
    %6 = vector.load %arg2[%c0_2, %c0_3, %c0_4] : memref<2x32x128xf32, #tpu.memory_space<vmem>>, vector<1x32x128xf32>
    %7 = vector.shape_cast %6 : vector<1x32x128xf32> to vector<32x128xf32>
    %cst_5 = arith.constant dense<0.000000e+00> : vector<34x128xf32>
    %8 = tpu.matmul %5, %7, %cst_5 {dimension_numbers = #tpu.dot_dimension_numbers<[1], [0], [0], [1], [0, 0, 1, 1], [], []>} : vector<34x32xf32>, vector<32x128xf32>, vector<34x128xf32> -> vector<34x128xf32>
    %9 = vector.extract_strided_slice %8 {offsets = [0, 0], sizes = [32, 32], strides = [1, 1]} : vector<34x128xf32> to vector<32x32xf32>
    %10 = vector.extract_strided_slice %8 {offsets = [0, 32], sizes = [32, 32], strides = [1, 1]} : vector<34x128xf32> to vector<32x32xf32>
    %11 = vector.extract_strided_slice %8 {offsets = [32, 64], sizes = [2, 32], strides = [1, 1]} : vector<34x128xf32> to vector<2x32xf32>
    %12 = vector.extract_strided_slice %8 {offsets = [32, 96], sizes = [2, 32], strides = [1, 1]} : vector<34x128xf32> to vector<2x32xf32>
    %13 = vector.extract_strided_slice %10 {offsets = [16, 0], sizes = [16, 32], strides = [1, 1]} : vector<32x32xf32> to vector<16x32xf32>
    %14 = vector.extract_strided_slice %10 {offsets = [0, 0], sizes = [16, 32], strides = [1, 1]} : vector<32x32xf32> to vector<16x32xf32>
    %15 = tpu.concatenate %13, %14 in 0 : vector<16x32xf32>, vector<16x32xf32> -> vector<32x32xf32>
    %16 = arith.addf %9, %15 : vector<32x32xf32>
    %17 = vector.extract_strided_slice %12 {offsets = [1, 0], sizes = [1, 32], strides = [1, 1]} : vector<2x32xf32> to vector<1x32xf32>
    %18 = vector.extract_strided_slice %12 {offsets = [0, 0], sizes = [1, 32], strides = [1, 1]} : vector<2x32xf32> to vector<1x32xf32>
    %19 = tpu.concatenate %17, %18 in 0 : vector<1x32xf32>, vector<1x32xf32> -> vector<2x32xf32>
    %20 = arith.addf %11, %19 : vector<2x32xf32>
    %c0_6 = arith.constant 0 : index
    %c0_7 = arith.constant 0 : index
    %c0_8 = arith.constant 0 : index
    %21 = vector.load %arg3[%c0_6, %c0_7, %c0_8] : memref<2x1x32xf32, #tpu.memory_space<vmem>>, vector<1x1x32xf32>
    %22 = vector.shape_cast %21 : vector<1x1x32xf32> to vector<1x32xf32>
    %23 = vector.broadcast %22 : vector<1x32xf32> to vector<2x32xf32>
    %24 = arith.addf %20, %23 : vector<2x32xf32>
    %25 = vector.shape_cast %16 : vector<32x32xf32> to vector<2x16x32xf32>
    %26 = vector.shape_cast %24 : vector<2x32xf32> to vector<2x1x32xf32>
    %27 = vector.broadcast %26 : vector<2x1x32xf32> to vector<2x16x32xf32>
    %28 = arith.addf %25, %27 : vector<2x16x32xf32>
    %cst_9 = arith.constant 0.000000e+00 : f32
    %29 = vector.broadcast %cst_9 : f32 to vector<2x16x32xf32>
    %30 = arith.maximumf %28, %29 : vector<2x16x32xf32>
    %31 = vector.shape_cast %30 : vector<2x16x32xf32> to vector<32x32xf32>
    %32 = vector.shape_cast %31 : vector<32x32xf32> to vector<2x16x32xf32>
    %cst_10 = arith.constant dense<0.000000e+00> : vector<2x32xf32>
    %33 = vector.multi_reduction <add>, %32, %cst_10 [1] : vector<2x16x32xf32> to vector<2x32xf32>
    %cst_11 = arith.constant 1.600000e+01 : f32
    %34 = vector.broadcast %cst_11 : f32 to vector<2x32xf32>
    %35 = arith.divf %33, %34 : vector<2x32xf32>
    %36 = tpu.concatenate %31, %35 in 0 : vector<32x32xf32>, vector<2x32xf32> -> vector<34x32xf32>
    %c1 = arith.constant 1 : index
    %c0_12 = arith.constant 0 : index
    %c0_13 = arith.constant 0 : index
    %37 = vector.load %arg2[%c1, %c0_12, %c0_13] : memref<2x32x128xf32, #tpu.memory_space<vmem>>, vector<1x32x128xf32>
    %38 = vector.shape_cast %37 : vector<1x32x128xf32> to vector<32x128xf32>
    %cst_14 = arith.constant dense<0.000000e+00> : vector<34x128xf32>
    %39 = tpu.matmul %36, %38, %cst_14 {dimension_numbers = #tpu.dot_dimension_numbers<[1], [0], [0], [1], [0, 0, 1, 1], [], []>} : vector<34x32xf32>, vector<32x128xf32>, vector<34x128xf32> -> vector<34x128xf32>
    %40 = vector.extract_strided_slice %39 {offsets = [0, 0], sizes = [32, 32], strides = [1, 1]} : vector<34x128xf32> to vector<32x32xf32>
    %41 = vector.extract_strided_slice %39 {offsets = [0, 32], sizes = [32, 32], strides = [1, 1]} : vector<34x128xf32> to vector<32x32xf32>
    %42 = vector.extract_strided_slice %39 {offsets = [32, 64], sizes = [2, 32], strides = [1, 1]} : vector<34x128xf32> to vector<2x32xf32>
    %43 = vector.extract_strided_slice %39 {offsets = [32, 96], sizes = [2, 32], strides = [1, 1]} : vector<34x128xf32> to vector<2x32xf32>
    %44 = vector.extract_strided_slice %41 {offsets = [16, 0], sizes = [16, 32], strides = [1, 1]} : vector<32x32xf32> to vector<16x32xf32>
    %45 = vector.extract_strided_slice %41 {offsets = [0, 0], sizes = [16, 32], strides = [1, 1]} : vector<32x32xf32> to vector<16x32xf32>
    %46 = tpu.concatenate %44, %45 in 0 : vector<16x32xf32>, vector<16x32xf32> -> vector<32x32xf32>
    %47 = arith.addf %40, %46 : vector<32x32xf32>
    %48 = vector.extract_strided_slice %43 {offsets = [1, 0], sizes = [1, 32], strides = [1, 1]} : vector<2x32xf32> to vector<1x32xf32>
    %49 = vector.extract_strided_slice %43 {offsets = [0, 0], sizes = [1, 32], strides = [1, 1]} : vector<2x32xf32> to vector<1x32xf32>
    %50 = tpu.concatenate %48, %49 in 0 : vector<1x32xf32>, vector<1x32xf32> -> vector<2x32xf32>
    %51 = arith.addf %42, %50 : vector<2x32xf32>
    %c1_15 = arith.constant 1 : index
    %c0_16 = arith.constant 0 : index
    %c0_17 = arith.constant 0 : index
    %52 = vector.load %arg3[%c1_15, %c0_16, %c0_17] : memref<2x1x32xf32, #tpu.memory_space<vmem>>, vector<1x1x32xf32>
    %53 = vector.shape_cast %52 : vector<1x1x32xf32> to vector<1x32xf32>
    %54 = vector.broadcast %53 : vector<1x32xf32> to vector<2x32xf32>
    %55 = arith.addf %51, %54 : vector<2x32xf32>
    %56 = vector.shape_cast %47 : vector<32x32xf32> to vector<2x16x32xf32>
    %cst_18 = arith.constant dense<0.000000e+00> : vector<2x32xf32>
    %57 = vector.multi_reduction <add>, %56, %cst_18 [1] : vector<2x16x32xf32> to vector<2x32xf32>
    %cst_19 = arith.constant 1.600000e+01 : f32
    %58 = vector.broadcast %cst_19 : f32 to vector<2x32xf32>
    %59 = arith.divf %57, %58 : vector<2x32xf32>
    %60 = arith.addf %59, %55 : vector<2x32xf32>
    %61 = vector.extract_strided_slice %60 {offsets = [0, 0], sizes = [1, 32], strides = [1, 1]} : vector<2x32xf32> to vector<1x32xf32>
    %62 = vector.extract_strided_slice %60 {offsets = [1, 0], sizes = [1, 32], strides = [1, 1]} : vector<2x32xf32> to vector<1x32xf32>
    %63 = tpu.concatenate %61, %62 in 1 : vector<1x32xf32>, vector<1x32xf32> -> vector<1x64xf32>
    %c0_20 = arith.constant 0 : index
    %c0_21 = arith.constant 0 : index
    %c0_22 = arith.constant 0 : index
    %64 = vector.load %arg4[%c0_20, %c0_21, %c0_22] : memref<1x1x64xf32, #tpu.memory_space<vmem>>, vector<1x1x64xf32>
    %65 = vector.shape_cast %64 : vector<1x1x64xf32> to vector<1x64xf32>
    %66 = vector.shape_cast %63 : vector<1x64xf32> to vector<1x1x64xf32>
    tpu.vector_store %arg4[%c0_20, %c0_21, %c0_22], %66 {strides = array<i32>} : memref<1x1x64xf32, #tpu.memory_space<vmem>>, vector<1x1x64xf32>,
    return
  }
  func.func @transform_0(%arg0: i32) -> (i32, i32) {
    %c0_i32 = arith.constant 0 : i32
    %c0_i32_0 = arith.constant 0 : i32
    return %arg0, %c0_i32 : i32, i32
  }
  func.func @transform_1(%arg0: i32) -> (i32, i32, i32) {
    %c0_i32 = arith.constant 0 : i32
    %c0_i32_0 = arith.constant 0 : i32
    %c0_i32_1 = arith.constant 0 : i32
    %c0_i32_2 = arith.constant 0 : i32
    return %c0_i32, %c0_i32_0, %c0_i32_1 : i32, i32, i32
  }
  func.func @transform_2(%arg0: i32) -> (i32, i32, i32) {
    %c0_i32 = arith.constant 0 : i32
    %c0_i32_0 = arith.constant 0 : i32
    %c0_i32_1 = arith.constant 0 : i32
    %c0_i32_2 = arith.constant 0 : i32
    return %c0_i32, %c0_i32_0, %c0_i32_1 : i32, i32, i32
  }
  func.func @transform_3(%arg0: i32) -> (i32, i32, i32) {
    %c0_i32 = arith.constant 0 : i32
    %c0_i32_0 = arith.constant 0 : i32
    %c0_i32_1 = arith.constant 0 : i32
    return %arg0, %c0_i32, %c0_i32_0 : i32, i32, i32
  }
}

</mosaic_0001>

<llo_original>
// kernel: _forward.1
$region0: #{_forward.1}
  #allocation0 [shape = 'u32[]', space=smem, size = 0x4, offset = 0x4, fixed_abs, tag = 'smem constant byte address 0x4 - core index']
  #allocation1 [shape = 'u32[144,128]{1,0:T(1,128)}', space=vmem, size = 0x12000, scoped, tag = 'internal scratch']
  %s0 = inlined_call_operand.vmem [shape: f32[64,32], index: 0, kind: input, shape index: {}]
  %s1 = inlined_call_operand.vmem [shape: f32[2,32,128], index: 1, kind: input, shape index: {}]
  %s2 = inlined_call_operand.vmem [shape: f32[2,1,32], index: 2, kind: input, shape index: {}]
  %s3 = inlined_call_operand.vmem [shape: f32[2,1,64], index: 3, kind: output, shape index: {}]
  %s4 = sld [smem:[#allocation0]]
  $region45: #{_forward.1} parent=0
    _
  %s6 = ssub.s32 1, %s4
  %s7 = scalar_select 0, %s6, %s4
  loop: start=0, step=1, limit=4
  $region2: #{_forward.1} parent=0 // loop_pre_header
    _
  $region3: #{_forward.1} parent=0 // loop_header
    %s9 = sphi 0, %s13
    %p10 = scmp.ge.s32.totalorder %s9, 4
    %s19 = sphi 0, %s21
    %s22 = sphi 0, %s19
    %s23 = sphi 0, %s22
    %s39 = sphi 0, %s23
    %s43 = sphi 0, %s43
    %s45 = sphi 0, %s43
    %s46 = sphi 0, %s45
    %s60 = sphi 0, %s46
    %s64 = sphi 0, %s64
    %s66 = sphi 0, %s64
    %s67 = sphi 0, %s66
    %s81 = sphi 0, %s67
    %s87 = sphi 0, %s89
    %s90 = sphi 0, %s87
    %s91 = sphi 0, %s90
    %s107 = sphi 0, %s91
  $region4: #{_forward.1} parent=0 // loop_header_branch
    %12 = sbr.rel (%p10) target = $region8
  $region5: #{_forward.1} parent=0 // loop_body
    %s14 = ssub.s32 %s9, 1
    %s15 = ssub.s32 %s9, 2
    %s16 = sadd.s32 %s9, 1
    %s17 = ssub.s32 %s9, %s16
    %p18 = scmp.eq.s32.totalorder %s17, 0
    %s20 = sadd.s32 %s19, 1
    %s21 = scalar_select %p18, %s19, %s20
    %p24 = pneg %p18
    %p25 = scmp.eq.s32.totalorder %s9, 1
    %p26 = por %p24, %p25
    %p27 = scmp.ne.s32.totalorder %s19, %s22
    %p28 = scmp.eq.s32.totalorder %s9, 0
    %p29 = por %p27, %p28
    %p30 = scmp.ne.s32.totalorder %s19, %s22
    %p31 = scmp.eq.s32.totalorder %s14, 1
    %p32 = por %p30, %p31
    %p33 = scmp.ne.s32.totalorder %s22, %s23
    %p34 = scmp.eq.s32.totalorder %s14, 0
    %p35 = por %p33, %p34
    %p36 = scmp.ne.s32.totalorder %s22, %s23
    %p37 = scmp.eq.s32.totalorder %s15, 1
    %p38 = por %p36, %p37
    %p40 = scmp.ne.s32.totalorder %s23, %s39
    %p41 = scmp.eq.s32.totalorder %s15, 0
    %p42 = por %p40, %p41
    %s44 = sadd.s32 %s43, 1
    %p47 = scmp.eq.s32.totalorder %s9, 1
    %p48 = scmp.ne.s32.totalorder %s43, %s45
    %p49 = scmp.eq.s32.totalorder %s9, 0
    %p50 = por %p48, %p49
    %p51 = scmp.ne.s32.totalorder %s43, %s45
    %p52 = scmp.eq.s32.totalorder %s14, 1
    %p53 = por %p51, %p52
    %p54 = scmp.ne.s32.totalorder %s45, %s46
    %p55 = scmp.eq.s32.totalorder %s14, 0
    %p56 = por %p54, %p55
    %p57 = scmp.ne.s32.totalorder %s45, %s46
    %p58 = scmp.eq.s32.totalorder %s15, 1
    %p59 = por %p57, %p58
    %p61 = scmp.ne.s32.totalorder %s46, %s60
    %p62 = scmp.eq.s32.totalorder %s15, 0
    %p63 = por %p61, %p62
    %s65 = sadd.s32 %s64, 1
    %p68 = scmp.eq.s32.totalorder %s9, 1
    %p69 = scmp.ne.s32.totalorder %s64, %s66
    %p70 = scmp.eq.s32.totalorder %s9, 0
    %p71 = por %p69, %p70
    %p72 = scmp.ne.s32.totalorder %s64, %s66
    %p73 = scmp.eq.s32.totalorder %s14, 1
    %p74 = por %p72, %p73
    %p75 = scmp.ne.s32.totalorder %s66, %s67
    %p76 = scmp.eq.s32.totalorder %s14, 0
    %p77 = por %p75, %p76
    %p78 = scmp.ne.s32.totalorder %s66, %s67
    %p79 = scmp.eq.s32.totalorder %s15, 1
    %p80 = por %p78, %p79
    %p82 = scmp.ne.s32.totalorder %s67, %s81
    %p83 = scmp.eq.s32.totalorder %s15, 0
    %p84 = por %p82, %p83
    %s85 = ssub.s32 %s9, %s16
    %p86 = scmp.eq.s32.totalorder %s85, 0
    %s88 = sadd.s32 %s87, 1
    %s89 = scalar_select %p86, %s87, %s88
    %p92 = pneg %p86
    %p93 = scmp.eq.s32.totalorder %s9, 1
    %p94 = por %p92, %p93
    %p95 = scmp.ne.s32.totalorder %s87, %s90
    %p96 = scmp.eq.s32.totalorder %s9, 0
    %p97 = por %p95, %p96
    %p98 = scmp.ne.s32.totalorder %s87, %s90
    %p99 = scmp.eq.s32.totalorder %s14, 1
    %p100 = por %p98, %p99
    %p101 = scmp.ne.s32.totalorder %s90, %s91
    %p102 = scmp.eq.s32.totalorder %s14, 0
    %p103 = por %p101, %p102
    %p104 = scmp.ne.s32.totalorder %s90, %s91
    %p105 = scmp.eq.s32.totalorder %s15, 1
    %p106 = por %p104, %p105
    %p108 = scmp.ne.s32.totalorder %s91, %s107
    %p109 = scmp.eq.s32.totalorder %s15, 0
    %p110 = por %p108, %p109
    %p111 = scmp.le.s32.totalorder 1, %s9
    %p112 = scmp.lt.s32.totalorder %s9, 3
    %p113 = pnand %p111, %p112
    %p114 = pneg %p113
    // Predicated region
    $region9: #{_forward.1} parent=5 // pred_check
      _
    $region10: #{_forward.1} parent=5 // pred_check_branch
      %116 = sbr.rel (%p113) target = $region12
    $region11: #{_forward.1} parent=5 // pred_region
      %s117 = ssub.s32 %s9, 1
      // Predicated region
      $region13: #{_forward.1} parent=11 // pred_check
        %p118 = pneg %p56
      $region14: #{_forward.1} parent=11 // pred_check_branch
        %120 = sbr.rel (%p118) target = $region16
      $region15: #{_forward.1} parent=11 // pred_region
        _
      $region16: #{_forward.1} parent=11 // pred_fallthru
        _
      // Predicated region
      $region17: #{_forward.1} parent=11 // pred_check
        %p121 = pneg %p77
      $region18: #{_forward.1} parent=11 // pred_check_branch
        %123 = sbr.rel (%p121) target = $region20
      $region19: #{_forward.1} parent=11 // pred_region
        _
      $region20: #{_forward.1} parent=11 // pred_fallthru
        _
    $region12: #{_forward.1} parent=5 // pred_fallthru
      _
    %p124 = scmp.lt.s32.totalorder %s9, 2
    // Predicated region
    $region21: #{_forward.1} parent=5 // pred_check
      %p125 = pneg %p124
    $region22: #{_forward.1} parent=5 // pred_check_branch
      %127 = sbr.rel (%p125) target = $region24
    $region23: #{_forward.1} parent=5 // pred_region
      // Predicated region
      $region25: #{_forward.1} parent=23 // pred_check
        %p128 = pneg %p29
      $region26: #{_forward.1} parent=23 // pred_check_branch
        %130 = sbr.rel (%p128) target = $region28
      $region27: #{_forward.1} parent=23 // pred_region
        %s131 = smul.u32 4, %s9
        %p132 = scmp.lt.s32.totalorder %s131, 7
        %s133 = scalar_select %p132, %s131, 7
        %s134 = smul.addr %s133, 8
        %s135 = scalar_lea.vmem %s0, %s134
        %s136 = smul.u32 4, %s9
      $region28: #{_forward.1} parent=23 // pred_fallthru
        _
    $region24: #{_forward.1} parent=5 // pred_fallthru
      _
    %p137 = scmp.le.s32.totalorder 1, %s9
    %p138 = scmp.lt.s32.totalorder %s9, 3
    %p139 = pnand %p137, %p138
    %p140 = pneg %p139
    // Predicated region
    $region29: #{_forward.1} parent=5 // pred_check
      _
    $region30: #{_forward.1} parent=5 // pred_check_branch
      %142 = sbr.rel (%p139) target = $region32
    $region31: #{_forward.1} parent=5 // pred_region
      %s143 = ssub.s32 %s9, 1
      %s144 = smul.u32 4, %s14
      %p145 = scmp.lt.s32.totalorder %s144, 7
      %s146 = scalar_select %p145, %s144, 7
      %s147 = smul.addr %s146, 8
      %s148 = scalar_lea.vmem %s0, %s147
      %p149 = pneg %p35
      %p150 = pneg %p32
      %p151 = pneg %p56
      %p152 = pneg %p53
      %p153 = pneg %p77
      %p154 = pneg %p74
      %p155 = pneg %p103
      %p156 = pneg %p100
      %p157 = scmp.lt.s32.totalorder %s14, 1
      %s158 = scalar_select %p157, %s14, 1
      %s159 = scalar_lea.vmem %s3, %s158
      %s160 = smul.u32 4, %s14
      %p161 = scmp.lt.s32.totalorder %s160, 7
      %s162 = scalar_select %p161, %s160, 7
      %s163 = smul.addr %s162, 8
      %s164 = scalar_lea.vmem %s0, %s163
      %s165 = smul.u32 4, %s14
      %p166 = scmp.lt.s32.totalorder %s14, 1
      %s167 = scalar_select %p166, %s14, 1
      %s168 = scalar_lea.vmem %s3, %s167
      %v169 = vld [vmem:[%s164] sm:$0xff]
      %v170 = vld [vmem:[%s164 + $0x8] sm:$0xff]
      %v171 = vld [vmem:[%s164 + $0x10] sm:$0xff]
      %v172 = vld [vmem:[%s164 + $0x18] sm:$0xff]
      %vm173 = vcmask 261120
      %v174 = vsel %vm173, %v169, 0.0
      %v175 = vsel %vm173, %v170, 0.0
      %v176 = vadd.f32 %v174, %v175
      %v177 = vrot.slane %v176, 4
      %v178 = vadd.f32 %v176, %v177
      %v179 = vrot.slane %v178, 2
      %v180 = vadd.f32 %v178, %v179
      %v181 = vrot.slane %v180, 1
      %v182 = vadd.f32 %v180, %v181
      %v183 = vsel %vm173, %v171, 0.0
      %v184 = vsel %vm173, %v172, 0.0
      %v185 = vadd.f32 %v183, %v184
      %v186 = vrot.slane %v185, 4
      %v187 = vadd.f32 %v185, %v186
      %v188 = vrot.slane %v187, 2
      %v189 = vadd.f32 %v187, %v188
      %v190 = vrot.slane %v189, 1
      %v191 = vadd.f32 %v189, %v190
      %v192 = vrcp.pop 16.0
      %v193 = vmul.f32 %v182, %v192
      %v194 = vmul.f32 %v191, %v192
      %vm197 = vcmask 1041409
      %v198 = vsel %vm197, %v194, %v193
      %v199 = vld [vmem:[%s1] sm:$0xff]
      %v200 = vld [vmem:[%s1 + $0x8] sm:$0xff]
      %v201 = vld [vmem:[%s1 + $0x10] sm:$0xff]
      %v202 = vld [vmem:[%s1 + $0x18] sm:$0xff]
      %v204 = vsel %vm173, %v169, 0
      %v207 = vsel %vm173, %v170, 0
      %v210 = vsel %vm173, %v171, 0
      %v213 = vsel %vm173, %v172, 0
      %v215 = vsel %vm173, %v198, 0
      %217 = vmatprep.subr.mxu0 0.0
      %218 = vmatpush1.msra.mxu0 0.0
      %219 = vmatprep.subr.mxu0 0.0
      %220 = vmatpush1.msra.mxu0 0.0
      %221 = vmatprep.subr.mxu0 0.0
      %222 = vmatpush1.msra.mxu0 0.0
      %223 = vmatprep.subr.mxu0 0.0
      %224 = vmatpush1.msra.mxu0 0.0
      %225 = vmatprep.subr.mxu0 0.0
      %226 = vmatpush1.msra.mxu0 0.0
      %227 = vmatprep.subr.mxu0 0.0
      %228 = vmatpush1.msra.mxu0 0.0
      %229 = vmatprep.subr.mxu0 0.0
      %230 = vmatpush1.msra.mxu0 0.0
      %231 = vmatprep.subr.mxu0 0.0
      %232 = vmatpush1.msra.mxu0 0.0
      %233 = vmatprep.subr.mxu0 0.0
      %234 = vmatpush1.msra.mxu0 0.0
      %235 = vmatprep.subr.mxu0 0.0
      %236 = vmatpush1.msra.mxu0 0.0
      %237 = vmatprep.subr.mxu0 0.0
      %238 = vmatpush1.msra.mxu0 0.0
      %239 = vmatprep.subr.mxu0 0.0
      %240 = vmatpush1.msra.mxu0 0.0
      %241 = vmatprep.subr.mxu0 0.0
      %242 = vmatpush1.msra.mxu0 %v202
      %243 = vmatprep.subr.mxu0 0.0
      %244 = vmatpush1.msra.mxu0 %v201
      %245 = vmatprep.subr.mxu0 0.0
      %246 = vmatpush1.msra.mxu0 %v200
      %247 = vmatprep.subr.mxu0 0.0
      %248 = vmatpush1.msra.mxu0 %v199
      %249 = vmatprep.subr.mxu0 0.0
      %250 = vmatpush2.msra.mxu0 0.0
      %251 = vmatprep.subr.mxu0 0.0
      %252 = vmatpush2.msra.mxu0 0.0
      %253 = vmatprep.subr.mxu0 0.0
      %254 = vmatpush2.msra.mxu0 0.0
      %255 = vmatprep.subr.mxu0 0.0
      %256 = vmatpush2.msra.mxu0 0.0
      %257 = vmatprep.subr.mxu0 0.0
      %258 = vmatpush2.msra.mxu0 0.0
      %259 = vmatprep.subr.mxu0 0.0
      %260 = vmatpush2.msra.mxu0 0.0
      %261 = vmatprep.subr.mxu0 0.0
      %262 = vmatpush2.msra.mxu0 0.0
      %263 = vmatprep.subr.mxu0 0.0
      %264 = vmatpush2.msra.mxu0 0.0
      %265 = vmatprep.subr.mxu0 0.0
      %266 = vmatpush2.msra.mxu0 0.0
      %267 = vmatprep.subr.mxu0 0.0
      %268 = vmatpush2.msra.mxu0 0.0
      %269 = vmatprep.subr.mxu0 0.0
      %270 = vmatpush2.msra.mxu0 0.0
      %271 = vmatprep.subr.mxu0 0.0
      %272 = vmatpush2.msra.mxu0 0.0
      %273 = vmatprep.subr.mxu0 0.0
      %274 = vmatpush2.msra.mxu0 0.0
      %275 = vmatprep.subr.mxu0 0.0
      %276 = vmatpush2.msra.mxu0 0.0
      %277 = vmatprep.subr.mxu0 0.0
      %278 = vmatpush2.msra.mxu0 0.0
      %279 = vmatprep.subr.mxu0 0.0
      %280 = vmatpush2.msra.mxu0 0.0
      %281 = vmatprep.mubr.f32.mxu0 0.0
      %282 = vmatmul.mubr.f32.gmra.mxu0 %v204
      %v283 = vpop.f32.mrf.mxu0
      %v284 = vadd.f32 0.0, %v283
      %v285 = vpop.f32.mrf.mxu0
      %286 = vmatprep.mubr.f32.mxu0 0.0
      %287 = vmatmul.mubr.f32.gmra.mxu0 %v207
      %v288 = vpop.f32.mrf.mxu0
      %v289 = vadd.f32 0.0, %v288
      %v290 = vpop.f32.mrf.mxu0
      %291 = vmatprep.mubr.f32.mxu0 0.0
      %292 = vmatmul.mubr.f32.gmra.mxu0 %v210
      %v293 = vpop.f32.mrf.mxu0
      %v294 = vadd.f32 0.0, %v293
      %v295 = vpop.f32.mrf.mxu0
      %296 = vmatprep.mubr.f32.mxu0 0.0
      %297 = vmatmul.mubr.f32.gmra.mxu0 %v213
      %v298 = vpop.f32.mrf.mxu0
      %v299 = vadd.f32 0.0, %v298
      %v300 = vpop.f32.mrf.mxu0
      %301 = vmatprep.mubr.f32.mxu0 0.0
      %302 = vmatmul.mubr.f32.gmra.mxu0 %v215
      %v303 = vpop.f32.mrf.mxu0
      %v304 = vadd.f32 0.0, %v303
      %v305 = vpop.f32.mrf.mxu0
      %306 = vdwg.mxu0
      %311 = vrot.lane.b32.xlu0 %v294, 96
      %v312 = vpop.permute.xlu0 %311
      %313 = vrot.lane.b32.xlu0 %v299, 96
      %v314 = vpop.permute.xlu0 %313
      %315 = vrot.lane.b32.xlu0 %v284, 96
      %v316 = vpop.permute.xlu0 %315
      %317 = vrot.lane.b32.xlu0 %v289, 96
      %v318 = vpop.permute.xlu0 %317
      %v323 = vadd.f32 %v284, %v312
      %v324 = vadd.f32 %v289, %v314
      %v325 = vadd.f32 %v294, %v316
      %v326 = vadd.f32 %v299, %v318
      %v328 = vrot.slane %v304, 1
      %v330 = vrot.slane %v304, 7
      %vm332 = vcmask 1040384
      %v333 = vsel %vm332, %v328, %v330
      %335 = vrot.lane.b32.xlu0 %v333, 96
      %v336 = vpop.permute.xlu0 %335
      %v338 = vadd.f32 %v304, %v336
      %v339 = vld [vmem:[%s2] sm:$0x1]
      %v341 = vlaneseq
      %v342 = vshrl.u32 %v341, 7
      %v343 = vsub.s32 0, %v342
      %v344 = vrot.slane %v339, %v343
      %345 = vrot.lane.b32.xlu0 %v344, 64
      %v346 = vpop.permute.xlu0 %345
      %v348 = vadd.f32 %v338, %v346
      %v351 = vunpack.c.l.s4 1966171168
      %v352 = vunpack.c.0.s8 %v351
      %v353 = vlaneseq
      %v354 = vshrl.u32 %v353, 7
      %v355 = vsub.s32 %v352, %v354
      %v356 = vrot.slane %v348, %v355
      %v357 = vcombine.high %v356, %v356
      %v359 = vunpack.c.l.s4 1966171168
      %v360 = vunpack.c.0.s8 %v359
      %v361 = vlaneseq
      %v362 = vshrl.u32 %v361, 7
      %v363 = vsub.s32 %v360, %v362
      %v364 = vrot.slane %v356, %v363
      %v366 = vunpack.c.l.s4 1966171168
      %v367 = vunpack.c.0.s8 %v366
      %v368 = vlaneseq
      %v369 = vshrl.u32 %v368, 7
      %v370 = vsub.s32 %v367, %v369
      %v371 = vrot.slane %v357, %v370
      %v372 = vlaneseq
      %v373 = vshrl.u32 %v372, 7
      %v374 = vsub.s32 0, %v373
      %v375 = vrot.slane %v364, %v374
      %v376 = vlaneseq
      %v377 = vshrl.u32 %v376, 7
      %v378 = vsub.s32 0, %v377
      %v379 = vrot.slane %v371, %v378
      %380 = vrot.lane.b32.xlu0 %v375, 64
      %v381 = vpop.permute.xlu0 %380
      %382 = vrot.lane.b32.xlu0 %v379, 64
      %v383 = vpop.permute.xlu0 %382
      %v386 = vadd.f32 %v323, %v381
      %v387 = vadd.f32 %v324, %v381
      %v388 = vadd.f32 %v325, %v383
      %v389 = vadd.f32 %v326, %v383
      %v390 = vmax.f32 %v386, 0.0
      %v391 = vmax.f32 %v387, 0.0
      %v392 = vmax.f32 %v388, 0.0
      %v393 = vmax.f32 %v389, 0.0
      %v394 = vsel %vm173, %v390, 0.0
      %v395 = vsel %vm173, %v391, 0.0
      %v396 = vadd.f32 %v394, %v395
      %v397 = vrot.slane %v396, 4
      %v398 = vadd.f32 %v396, %v397
      %v399 = vrot.slane %v398, 2
      %v400 = vadd.f32 %v398, %v399
      %v401 = vrot.slane %v400, 1
      %v402 = vadd.f32 %v400, %v401
      %v403 = vsel %vm173, %v392, 0.0
      %v404 = vsel %vm173, %v393, 0.0
      %v405 = vadd.f32 %v403, %v404
      %v406 = vrot.slane %v405, 4
      %v407 = vadd.f32 %v405, %v406
      %v408 = vrot.slane %v407, 2
      %v409 = vadd.f32 %v407, %v408
      %v410 = vrot.slane %v409, 1
      %v411 = vadd.f32 %v409, %v410
      %v412 = vmul.f32 %v402, %v192
      %v413 = vmul.f32 %v411, %v192
      %v416 = vsel %vm197, %v413, %v412
      %s417 = scalar_lea.vmem %s1, 32
      %v418 = vld [vmem:[%s417] sm:$0xff]
      %v419 = vld [vmem:[%s417 + $0x8] sm:$0xff]
      %v420 = vld [vmem:[%s417 + $0x10] sm:$0xff]
      %v421 = vld [vmem:[%s417 + $0x18] sm:$0xff]
      %v423 = vsel %vm173, %v390, 0
      %v426 = vsel %vm173, %v391, 0
      %v429 = vsel %vm173, %v392, 0
      %v432 = vsel %vm173, %v393, 0
      %v434 = vsel %vm173, %v416, 0
      %436 = vmatprep.subr.mxu0 0.0
      %437 = vmatpush1.msra.mxu0 0.0
      %438 = vmatprep.subr.mxu0 0.0
      %439 = vmatpush1.msra.mxu0 0.0
      %440 = vmatprep.subr.mxu0 0.0
      %441 = vmatpush1.msra.mxu0 0.0
      %442 = vmatprep.subr.mxu0 0.0
      %443 = vmatpush1.msra.mxu0 0.0
      %444 = vmatprep.subr.mxu0 0.0
      %445 = vmatpush1.msra.mxu0 0.0
      %446 = vmatprep.subr.mxu0 0.0
      %447 = vmatpush1.msra.mxu0 0.0
      %448 = vmatprep.subr.mxu0 0.0
      %449 = vmatpush1.msra.mxu0 0.0
      %450 = vmatprep.subr.mxu0 0.0
      %451 = vmatpush1.msra.mxu0 0.0
      %452 = vmatprep.subr.mxu0 0.0
      %453 = vmatpush1.msra.mxu0 0.0
      %454 = vmatprep.subr.mxu0 0.0
      %455 = vmatpush1.msra.mxu0 0.0
      %456 = vmatprep.subr.mxu0 0.0
      %457 = vmatpush1.msra.mxu0 0.0
      %458 = vmatprep.subr.mxu0 0.0
      %459 = vmatpush1.msra.mxu0 0.0
      %460 = vmatprep.subr.mxu0 0.0
      %461 = vmatpush1.msra.mxu0 %v421
      %462 = vmatprep.subr.mxu0 0.0
      %463 = vmatpush1.msra.mxu0 %v420
      %464 = vmatprep.subr.mxu0 0.0
      %465 = vmatpush1.msra.mxu0 %v419
      %466 = vmatprep.subr.mxu0 0.0
      %467 = vmatpush1.msra.mxu0 %v418
      %468 = vmatprep.subr.mxu0 0.0
      %469 = vmatpush2.msra.mxu0 0.0
      %470 = vmatprep.subr.mxu0 0.0
      %471 = vmatpush2.msra.mxu0 0.0
      %472 = vmatprep.subr.mxu0 0.0
      %473 = vmatpush2.msra.mxu0 0.0
      %474 = vmatprep.subr.mxu0 0.0
      %475 = vmatpush2.msra.mxu0 0.0
      %476 = vmatprep.subr.mxu0 0.0
      %477 = vmatpush2.msra.mxu0 0.0
      %478 = vmatprep.subr.mxu0 0.0
      %479 = vmatpush2.msra.mxu0 0.0
      %480 = vmatprep.subr.mxu0 0.0
      %481 = vmatpush2.msra.mxu0 0.0
      %482 = vmatprep.subr.mxu0 0.0
      %483 = vmatpush2.msra.mxu0 0.0
      %484 = vmatprep.subr.mxu0 0.0
      %485 = vmatpush2.msra.mxu0 0.0
      %486 = vmatprep.subr.mxu0 0.0
      %487 = vmatpush2.msra.mxu0 0.0
      %488 = vmatprep.subr.mxu0 0.0
      %489 = vmatpush2.msra.mxu0 0.0
      %490 = vmatprep.subr.mxu0 0.0
      %491 = vmatpush2.msra.mxu0 0.0
      %492 = vmatprep.subr.mxu0 0.0
      %493 = vmatpush2.msra.mxu0 0.0
      %494 = vmatprep.subr.mxu0 0.0
      %495 = vmatpush2.msra.mxu0 0.0
      %496 = vmatprep.subr.mxu0 0.0
      %497 = vmatpush2.msra.mxu0 0.0
      %498 = vmatprep.subr.mxu0 0.0
      %499 = vmatpush2.msra.mxu0 0.0
      %500 = vmatprep.mubr.f32.mxu0 0.0
      %501 = vmatmul.mubr.f32.gmra.mxu0 %v423
      %v502 = vpop.f32.mrf.mxu0
      %v503 = vadd.f32 0.0, %v502
      %v504 = vpop.f32.mrf.mxu0
      %505 = vmatprep.mubr.f32.mxu0 0.0
      %506 = vmatmul.mubr.f32.gmra.mxu0 %v426
      %v507 = vpop.f32.mrf.mxu0
      %v508 = vadd.f32 0.0, %v507
      %v509 = vpop.f32.mrf.mxu0
      %510 = vmatprep.mubr.f32.mxu0 0.0
      %511 = vmatmul.mubr.f32.gmra.mxu0 %v429
      %v512 = vpop.f32.mrf.mxu0
      %v513 = vadd.f32 0.0, %v512
      %v514 = vpop.f32.mrf.mxu0
      %515 = vmatprep.mubr.f32.mxu0 0.0
      %516 = vmatmul.mubr.f32.gmra.mxu0 %v432
      %v517 = vpop.f32.mrf.mxu0
      %v518 = vadd.f32 0.0, %v517
      %v519 = vpop.f32.mrf.mxu0
      %520 = vmatprep.mubr.f32.mxu0 0.0
      %521 = vmatmul.mubr.f32.gmra.mxu0 %v434
      %v522 = vpop.f32.mrf.mxu0
      %v523 = vadd.f32 0.0, %v522
      %v524 = vpop.f32.mrf.mxu0
      %525 = vdwg.mxu0
      %530 = vrot.lane.b32.xlu0 %v513, 96
      %v531 = vpop.permute.xlu0 %530
      %532 = vrot.lane.b32.xlu0 %v518, 96
      %v533 = vpop.permute.xlu0 %532
      %534 = vrot.lane.b32.xlu0 %v503, 96
      %v535 = vpop.permute.xlu0 %534
      %536 = vrot.lane.b32.xlu0 %v508, 96
      %v537 = vpop.permute.xlu0 %536
      %v542 = vadd.f32 %v503, %v531
      %v543 = vadd.f32 %v508, %v533
      %v544 = vadd.f32 %v513, %v535
      %v545 = vadd.f32 %v518, %v537
      %v547 = vrot.slane %v523, 1
      %v549 = vrot.slane %v523, 7
      %v551 = vsel %vm332, %v547, %v549
      %553 = vrot.lane.b32.xlu0 %v551, 96
      %v554 = vpop.permute.xlu0 %553
      %v556 = vadd.f32 %v523, %v554
      %s557 = scalar_lea.vmem %s2, 1
      %v558 = vld [vmem:[%s557] sm:$0x1]
      %v560 = vlaneseq
      %v561 = vshrl.u32 %v560, 7
      %v562 = vsub.s32 0, %v561
      %v563 = vrot.slane %v558, %v562
      %564 = vrot.lane.b32.xlu0 %v563, 64
      %v565 = vpop.permute.xlu0 %564
      %v567 = vadd.f32 %v556, %v565
      %v568 = vsel %vm173, %v542, 0.0
      %v569 = vsel %vm173, %v543, 0.0
      %v570 = vadd.f32 %v568, %v569
      %v571 = vrot.slane %v570, 4
      %v572 = vadd.f32 %v570, %v571
      %v573 = vrot.slane %v572, 2
      %v574 = vadd.f32 %v572, %v573
      %v575 = vrot.slane %v574, 1
      %v576 = vadd.f32 %v574, %v575
      %v577 = vsel %vm173, %v544, 0.0
      %v578 = vsel %vm173, %v545, 0.0
      %v579 = vadd.f32 %v577, %v578
      %v580 = vrot.slane %v579, 4
      %v581 = vadd.f32 %v579, %v580
      %v582 = vrot.slane %v581, 2
      %v583 = vadd.f32 %v581, %v582
      %v584 = vrot.slane %v583, 1
      %v585 = vadd.f32 %v583, %v584
      %v586 = vmul.f32 %v576, %v192
      %v587 = vmul.f32 %v585, %v192
      %v589 = vrot.slane %v567, 1
      %590 = vrot.lane.b32.xlu0 %v567, 64
      %v591 = vpop.permute.xlu0 %590
      %592 = vrot.lane.b32.xlu0 %v589, 64
      %v593 = vpop.permute.xlu0 %592
      %v596 = vadd.f32 %v586, %v591
      %v597 = vadd.f32 %v587, %v593
      %599 = vrot.lane.b32.xlu0 %v597, 32
      %v600 = vpop.permute.xlu0 %599
      %v602 = vsel %vm173, %v596, %v600
      %vm603 = vcmask 516096
      %604 = vst.msk [vmem:[%s168] sm:$0x1] %vm603, %v602
      %p605 = scmp.lt.s32.totalorder %s14, 1
      %s606 = scalar_select %p605, %s14, 1
      %s607 = scalar_lea.vmem %s3, %s606
      // Predicated region
      $region33: #{_forward.1} parent=31 // pred_check
        %p608 = pneg %p100
      $region34: #{_forward.1} parent=31 // pred_check_branch
        %610 = sbr.rel (%p608) target = $region36
      $region35: #{_forward.1} parent=31 // pred_region
        _
      $region36: #{_forward.1} parent=31 // pred_fallthru
        _
    $region32: #{_forward.1} parent=5 // pred_fallthru
      _
    %p611 = scmp.le.s32.totalorder 2, %s9
    // Predicated region
    $region37: #{_forward.1} parent=5 // pred_check
      %p612 = pneg %p611
    $region38: #{_forward.1} parent=5 // pred_check_branch
      %614 = sbr.rel (%p612) target = $region40
    $region39: #{_forward.1} parent=5 // pred_region
      %s615 = ssub.s32 %s9, 2
      // Predicated region
      $region41: #{_forward.1} parent=39 // pred_check
        %p616 = pneg %p106
      $region42: #{_forward.1} parent=39 // pred_check_branch
        %618 = sbr.rel (%p616) target = $region44
      $region43: #{_forward.1} parent=39 // pred_region
        %p619 = scmp.lt.s32.totalorder %s15, 1
        %s620 = scalar_select %p619, %s15, 1
        %s621 = scalar_lea.vmem %s3, %s620
      $region44: #{_forward.1} parent=39 // pred_fallthru
        _
    $region40: #{_forward.1} parent=5 // pred_fallthru
      _
  $region6: #{_forward.1} parent=0 // loop_footer
    %s13 = sadd.s32 1, %s9
  $region7: #{_forward.1} parent=0 // loop_footer_branch
    %8 = sbr.rel target = $region3
  $region8: #{_forward.1} parent=0 // loop_exit
    _

</llo_original>
